<compile_context>
chip_gen: v6e
topology: v6e:2x2x1
jax: 0.10.0
libtpu: 0.0.40
codegen_flags: <defaults>
</compile_context>

<pallas_src>
import functools

import jax
import jax.numpy as jnp
import numpy as np
from jax.experimental import pallas as pl
from jax.experimental.pallas import tpu as pltpu


def _round_up(x, m):
    return ((x + m - 1) // m) * m


# --------------------------------------------------------------------------------------
# Tiled linear kernel:  o = x @ w_t + b     (w_t is [K, N], bias is [1, N])
# --------------------------------------------------------------------------------------
def _linear_kernel(x_ref, w_ref, b_ref, o_ref):
    o_ref[...] = (
        jnp.dot(x_ref[...], w_ref[...], preferred_element_type=jnp.float32)
        + b_ref[...]
    ).astype(o_ref.dtype)


def pallas_linear(x, w_t, b, *, block_m=None):
    """x: [M, K], w_t: [K, N] (pre-transposed), b: [N] -> [M, N]."""
    M, K = x.shape
    N = w_t.shape[1]
    if block_m is None:
        block_m = 256
    block_m = min(block_m, _round_up(M, 8))
    Mp = _round_up(M, block_m)
    if Mp != M:
        x = jnp.pad(x, ((0, Mp - M), (0, 0)))
    b2 = b.reshape(1, N)

    out = pl.pallas_call(
        _linear_kernel,
        out_shape=jax.ShapeDtypeStruct((Mp, N), x.dtype),
        grid=(Mp // block_m,),
        in_specs=[
            pl.BlockSpec((block_m, K), lambda i: (i, 0)),
            pl.BlockSpec((K, N), lambda i: (0, 0)),   # weight stays resident
            pl.BlockSpec((1, N), lambda i: (0, 0)),
        ],
        out_specs=pl.BlockSpec((block_m, N), lambda i: (i, 0)),
        compiler_params=pltpu.CompilerParams(
            dimension_semantics=("parallel",),
            vmem_limit_bytes=64 * 1024 * 1024,
        ),
    )(x, w_t, b2)
    return out[:M] if Mp != M else out


# --------------------------------------------------------------------------------------
# Fused relation-attention kernel (flash-style over the key/src axis).
#
# Layouts inside the kernel (per grid step (ti, si)):
#   q    : [tT, B, E]
#   k, v : [tS, B, E]
#   rel  : [tS, tT, B, E]   raw relation tile; dim0 indexed by key j, dim1 by query i
#                           (the torch ra/rb.transpose(0,1) is just the (si, ti) index_map)
#   wra  : [E, E]  relation weight for ra, pre-scaled by softmax scaling
#   wrb  : [E, E]  relation weight for rb
#   hsum : [E, H]  hsum[e, h] = 1 if e // head_dim == h   (per-head d reduction on MXU)
#   hexp : [H, E]  hsum.T                                  (head -> E expansion on MXU)
# --------------------------------------------------------------------------------------
def _rel_attn_kernel(q_ref, k_ref, v_ref, rel_ref, wra_ref, wrb_ref, hsum_ref, hexp_ref,
                     o_ref, m_ref, l_ref, acc_ref, *, scaling, num_heads, s_valid, mask_keys):
    si = pl.program_id(1)

    @pl.when(si == 0)
    def _init():
        m_ref[...] = jnp.full(m_ref.shape, -jnp.inf, m_ref.dtype)
        l_ref[...] = jnp.zeros(l_ref.shape, l_ref.dtype)
        acc_ref[...] = jnp.zeros(acc_ref.shape, acc_ref.dtype)

    tT, B, E = q_ref.shape
    tS = k_ref.shape[0]
    H = num_heads

    q = q_ref[...].astype(jnp.float32) * scaling          # [tT, B, E]
    k = k_ref[...].astype(jnp.float32)                    # [tS, B, E]
    v = v_ref[...].astype(jnp.float32)                    # [tS, B, E]
    rel2d = rel_ref[...].astype(jnp.float32).reshape(tS * tT * B, E)

    # Fused relation projection on the MXU (wra already folds the softmax scaling).
    ra = jnp.dot(rel2d, wra_ref[...],
                 preferred_element_type=jnp.float32).reshape(tS, tT, B, E)
    rb = jnp.dot(rel2d, wrb_ref[...],
                 preferred_element_type=jnp.float32).reshape(tS, tT, B, E)

    # (q_i + ra_{j,i}) * scaling  and  k_j + rb_{j,i}
    qe = q[None, :, :, :] + ra                             # [tS, tT, B, E]
    ke = k[:, None, :, :] + rb                             # [tS, tT, B, E]
    prod = qe * ke                                         # lane-dense over E

    # Per-head reduction over d routed through the MXU: [tS*tT*B, E] @ [E, H]
    s = jnp.dot(prod.reshape(tS * tT * B, E), hsum_ref[...],
                preferred_element_type=jnp.float32).reshape(tS, tT, B, H)

    if mask_keys:
        j_idx = si * tS + jax.lax.broadcasted_iota(jnp.int32, (tS, tT, B, H), 0)
        s = jnp.where(j_idx < s_valid, s, -jnp.inf)

    # Online softmax over the key axis (axis 0 of s).
    m_prev = m_ref[...]
    m_new = jnp.maximum(m_prev, jnp.max(s, axis=0))        # [tT, B, H]
    alpha = jnp.exp(m_prev - m_new)
    p = jnp.exp(s - m_new[None, :, :, :])                  # [tS, tT, B, H]
    l_ref[...] = alpha * l_ref[...] + jnp.sum(p, axis=0)
    m_ref[...] = m_new

    # attn += p @ v : expand p back to E lanes on the MXU, then lane-dense mul/accumulate.
    p_e = jnp.dot(p.reshape(tS * tT * B, H), hexp_ref[...],
                  preferred_element_type=jnp.float32).reshape(tS, tT, B, E)
    pv = jnp.sum(p_e * v[:, None, :, :], axis=0)           # [tT, B, E]
    alpha_e = jnp.dot(alpha.reshape(tT * B, H), hexp_ref[...],
                      preferred_element_type=jnp.float32).reshape(tT, B, E)
    acc_ref[...] = alpha_e * acc_ref[...] + pv

    @pl.when(si == pl.num_programs(1) - 1)
    def _finalize():
        l = l_ref[...]
        r = pl.reciprocal(l, approx=True)
        r = r * (2.0 - l * r)                              # one Newton step -> ~f32 accuracy
        r_e = jnp.dot(r.reshape(tT * B, H), hexp_ref[...],
                      preferred_element_type=jnp.float32).reshape(tT, B, E)
        o_ref[...] = (acc_ref[...] * r_e).astype(o_ref.dtype)


def _pick_attn_tile(L, B, E, budget_bytes=24 * 1024 * 1024):
    # ~10 live f32 copies of a [t, t, B, E] tile coexist (rel double-buffer + ra/rb/
    # qe/ke/prod/p_e intermediates); keep them under a generation-safe VMEM budget
    # (v7x has only 64 MiB physical / 32 MiB scoped by default).
    t = 256
    while t > 8 and 10 * t * t * B * E * 4 > budget_bytes:
        t //= 2
    return L if L <= t else t


def pallas_rel_attention(q, k, v, relation, wr_t, num_heads, scaling,
                         *, tile_t=None, tile_s=None):
    """q: [T,B,E], k/v: [S,B,E], relation: [T,S,B,E], wr_t: [E,2E] -> [T,B,E]."""
    T, B, E = q.shape
    S = k.shape[0]
    H = num_heads
    d = E // H

    # Fold the softmax scaling into the ra half of the relation weight.
    wra = (wr_t[:, :E] * jnp.float32(scaling)).astype(jnp.float32)
    wrb = wr_t[:, E:].astype(jnp.float32)

    head_id = jnp.arange(E, dtype=jnp.int32) // d
    hsum = (head_id[:, None] == jnp.arange(H, dtype=jnp.int32)[None, :]).astype(jnp.float32)
    hexp = hsum.T                                           # [H, E]

    tT = tile_t or _pick_attn_tile(T, B, E)
    tS = tile_s or _pick_attn_tile(S, B, E)
    Tp = _round_up(T, tT)
    Sp = _round_up(S, tS)
    nT, nS = Tp // tT, Sp // tS

    def _pad_dim(x, axis, target):
        if x.shape[axis] == target:
            return x
        pads = [(0, 0)] * x.ndim
        pads[axis] = (0, target - x.shape[axis])
        return jnp.pad(x, pads)

    qp = _pad_dim(q, 0, Tp)
    kp = _pad_dim(k, 0, Sp)
    vp = _pad_dim(v, 0, Sp)
    relp = _pad_dim(_pad_dim(relation, 0, Sp), 1, Tp)

    kernel = functools.partial(
        _rel_attn_kernel,
        scaling=float(scaling),
        num_heads=H,
        s_valid=S,
        mask_keys=(Sp != S),
    )

    cost = pl.CostEstimate(
        flops=int(2 * Sp * Tp * B * E * (2 * E + 2 * H) + 8 * Sp * Tp * B * E),
        transcendentals=int(Sp * Tp * B * H + 2 * Tp * B * H),
        bytes_accessed=int(4 * (Sp * Tp * B * E + 2 * Sp * B * E + 2 * Tp * B * E
                                + 2 * E * E + 2 * E * H)),
    )

    out = pl.pallas_call(
        kernel,
        out_shape=jax.ShapeDtypeStruct((Tp, B, E), q.dtype),
        grid=(nT, nS),
        in_specs=[
            pl.BlockSpec((tT, B, E), lambda ti, si: (ti, 0, 0)),        # q
            pl.BlockSpec((tS, B, E), lambda ti, si: (si, 0, 0)),        # k
            pl.BlockSpec((tS, B, E), lambda ti, si: (si, 0, 0)),        # v
            pl.BlockSpec((tS, tT, B, E), lambda ti, si: (si, ti, 0, 0)),  # relation (transpose via index_map)
            pl.BlockSpec((E, E), lambda ti, si: (0, 0)),                # wra
            pl.BlockSpec((E, E), lambda ti, si: (0, 0)),                # wrb
            pl.BlockSpec((E, H), lambda ti, si: (0, 0)),                # head-sum matrix
            pl.BlockSpec((H, E), lambda ti, si: (0, 0)),                # head-expand matrix
        ],
        out_specs=pl.BlockSpec((tT, B, E), lambda ti, si: (ti, 0, 0)),
        scratch_shapes=[
            pltpu.VMEM((tT, B, H), jnp.float32),   # running max
            pltpu.VMEM((tT, B, H), jnp.float32),   # running denominator
            pltpu.VMEM((tT, B, E), jnp.float32),   # output accumulator
        ],
        compiler_params=pltpu.CompilerParams(
            dimension_semantics=("parallel", "arbitrary"),
            vmem_limit_bytes=64 * 1024 * 1024,
        ),
        cost_estimate=cost,
    )(qp, kp, vp, relp, wra, wrb, hsum, hexp)

    return out[:T] if Tp != T else out


# --------------------------------------------------------------------------------------
# Parameters (deterministic init, mirrors reset_parameters(); weights stored pre-transposed)
# --------------------------------------------------------------------------------------
def init_params(key, embed_dim, num_heads):
    E = embed_dim
    k1, k2, k3 = jax.random.split(key, 3)
    in_proj_weight = 0.02 * jax.random.normal(k1, (3 * E, E), jnp.float32)
    relation_weight = 0.02 * jax.random.normal(k2, (2 * E, E), jnp.float32)  # bias=False
    out_weight = 0.02 * jax.random.normal(k3, (E, E), jnp.float32)
    return dict(
        num_heads=num_heads,
        in_proj_weight_t=in_proj_weight.T,     # [E, 3E]
        in_proj_bias=jnp.zeros((3 * E,), jnp.float32),
        relation_weight_t=relation_weight.T,   # [E, 2E]
        out_weight_t=out_weight.T,             # [E, E]
        out_bias=jnp.zeros((E,), jnp.float32),
    )


# --------------------------------------------------------------------------------------
# Forward pass (glue in JAX, hot paths in Pallas)
# --------------------------------------------------------------------------------------
def relation_mha_forward(params, query, key, value, relation, *, tile_t=None, tile_s=None):
    T, B, E = query.shape
    S = key.shape[0]
    assert T == S, "the module's broadcast (q.unsqueeze(1) + ra.transpose(0,1)) requires tgt_len == src_len"
    H = params["num_heads"]
    d = E // H
    scaling = float(d) ** -0.5

    Wqkv_t, bqkv = params["in_proj_weight_t"], params["in_proj_bias"]

    # in_proj (fused [E,3E] matmul when query/key/value alias, as in the torch fast path)
    if (query is key) and (key is value):
        qkv = pallas_linear(query.reshape(T * B, E), Wqkv_t, bqkv)      # [T*B, 3E]
        q, k, v = qkv[:, :E], qkv[:, E:2 * E], qkv[:, 2 * E:]
    else:
        q = pallas_linear(query.reshape(T * B, E), Wqkv_t[:, :E], bqkv[:E])
        k = pallas_linear(key.reshape(S * B, E), Wqkv_t[:, E:2 * E], bqkv[E:2 * E])
        v = pallas_linear(value.reshape(S * B, E), Wqkv_t[:, 2 * E:], bqkv[2 * E:])
    q = q.reshape(T, B, E)
    k = k.reshape(S, B, E)
    v = v.reshape(S, B, E)

    # Fused relation-projection + attention (relation read from HBM exactly once).
    attn = pallas_rel_attention(q, k, v, relation, params["relation_weight_t"],
                                H, scaling, tile_t=tile_t, tile_s=tile_s)   # [T, B, E]

    out = pallas_linear(attn.reshape(T * B, E), params["out_weight_t"],
                        params["out_bias"]).reshape(T, B, E)
    return out, None  # need_weights=False -> attn_weights is None


# --------------------------------------------------------------------------------------
# Pure-JAX reference (mirrors the torch code literally) for correctness checks
# --------------------------------------------------------------------------------------
def reference_forward(params, query, key, value, relation):
    T, B, E = query.shape
    S = key.shape[0]
    H = params["num_heads"]
    d = E // H
    BH = B * H
    scaling = float(d) ** -0.5
    W, b = params["in_proj_weight_t"], params["in_proj_bias"]

    q = (query @ W[:, :E] + b[:E]).reshape(T, BH, d)
    k = (key @ W[:, E:2 * E] + b[E:2 * E]).reshape(S, BH, d)
    v = (value @ W[:, 2 * E:] + b[2 * E:]).reshape(S, BH, d)

    rel = relation @ params["relation_weight_t"]
    ra, rb = rel[..., :E], rel[..., E:]
    ra = jnp.transpose(ra.reshape(T, S, BH, d), (1, 0, 2, 3))
    rb = jnp.transpose(rb.reshape(T, S, BH, d), (1, 0, 2, 3))

    qe = (q[:, None] + ra) * scaling
    ke = k[None, :] + rb
    aw = jnp.einsum("ijbn,ijbn->ijb", qe, ke)
    aw = jax.nn.softmax(aw, axis=1)
    attn = jnp.einsum("ijb,jbn->bin", aw, v)
    attn = jnp.transpose(attn, (1, 0, 2)).reshape(T, B, E)
    return attn @ params["out_weight_t"] + params["out_bias"]


# --------------------------------------------------------------------------------------
if __name__ == "__main__":
    E, H = 32, 4
    root = jax.random.PRNGKey(0)
    kp, kq1, kr1, kq2, kr2 = jax.random.split(root, 5)
    params = init_params(kp, E, H)

    # Config 1: multi-tile flash path (T=S=16, 8x8 tiles), fused-QKV fast path.
    T1, B1 = 16, 2
    x1 = jax.random.normal(kq1, (T1, B1, E), jnp.float32)
    rel1 = jax.random.normal(kr1, (T1, T1, B1, E), jnp.float32)
    out1, attn_w = relation_mha_forward(params, x1, x1, x1, rel1, tile_t=8, tile_s=8)
    out1 = jax.block_until_ready(out1)
    assert out1.shape == (T1, B1, E) and attn_w is None
    ref1 = reference_forward(params, x1, x1, x1, rel1)
    np.testing.assert_allclose(np.asarray(out1), np.asarray(ref1), rtol=1e-3, atol=1e-3)

    # Config 2: non-multiple length (T=S=12 with 8x8 tiles) exercising padding + key masking,
    # and the separate q/k/v projection branch.
    T2, B2 = 12, 2
    x2 = jax.random.normal(kq2, (T2, B2, E), jnp.float32)
    rel2 = jax.random.normal(kr2, (T2, T2, B2, E), jnp.float32)
    out2, _ = relation_mha_forward(params, x2, x2, x2 * 1.0, rel2, tile_t=8, tile_s=8)
    out2 = jax.block_until_ready(out2)
    ref2 = reference_forward(params, x2, x2, x2, rel2)
    np.testing.assert_allclose(np.asarray(out2), np.asarray(ref2), rtol=1e-3, atol=1e-3)

    print("KERNEL_OK")
</pallas_src>

<mosaic_0001>
module attributes {stable_mosaic.version = 11 : i64} {
  func.func @_linear_kernel(%arg0: i32, %arg1: memref<32x32xf32, #tpu.memory_space<vmem>>, %arg2: memref<32x96xf32, #tpu.memory_space<vmem>>, %arg3: memref<1x96xf32, #tpu.memory_space<vmem>>, %arg4: memref<32x96xf32, #tpu.memory_space<vmem>>) attributes {dimension_semantics = [#tpu.dimension_semantics<parallel>], iteration_bounds = array<i64: 1>, scalar_prefetch = 0 : i64, scratch_operands = 0 : i64, tpu.core_type = #tpu.core_type<tc>, window_params = [{transform_indices = @transform_0, window_bounds = array<i64: 32, 32>}, {pipeline_mode = #tpu.pipeline_mode<synchronous>, transform_indices = @transform_1, window_bounds = array<i64: 32, 96>}, {pipeline_mode = #tpu.pipeline_mode<synchronous>, transform_indices = @transform_2, window_bounds = array<i64: 1, 96>}, {transform_indices = @transform_3, window_bounds = array<i64: 32, 96>}]} {
    %c0 = arith.constant 0 : index
    %c0_0 = arith.constant 0 : index
    %0 = vector.load %arg1[%c0, %c0_0] : memref<32x32xf32, #tpu.memory_space<vmem>>, vector<32x32xf32>
    %c0_1 = arith.constant 0 : index
    %c0_2 = arith.constant 0 : index
    %1 = vector.load %arg2[%c0_1, %c0_2] : memref<32x96xf32, #tpu.memory_space<vmem>>, vector<32x96xf32>
    %cst = arith.constant dense<0.000000e+00> : vector<32x96xf32>
    %2 = tpu.matmul %0, %1, %cst {dimension_numbers = #tpu.dot_dimension_numbers<[1], [0], [0], [1], [0, 0, 1, 1], [], []>} : vector<32x32xf32>, vector<32x96xf32>, vector<32x96xf32> -> vector<32x96xf32>
    %c0_3 = arith.constant 0 : index
    %c0_4 = arith.constant 0 : index
    %3 = vector.load %arg3[%c0_3, %c0_4] : memref<1x96xf32, #tpu.memory_space<vmem>>, vector<1x96xf32>
    %4 = vector.broadcast %3 : vector<1x96xf32> to vector<32x96xf32>
    %5 = arith.addf %2, %4 : vector<32x96xf32>
    %c0_5 = arith.constant 0 : index
    %c0_6 = arith.constant 0 : index
    %6 = vector.load %arg4[%c0_5, %c0_6] : memref<32x96xf32, #tpu.memory_space<vmem>>, vector<32x96xf32>
    tpu.vector_store %arg4[%c0_5, %c0_6], %5 {strides = array<i32>} : memref<32x96xf32, #tpu.memory_space<vmem>>, vector<32x96xf32>,
    return
  }
  func.func @transform_0(%arg0: i32) -> (i32, i32) {
    %c0_i32 = arith.constant 0 : i32
    %c0_i32_0 = arith.constant 0 : i32
    return %arg0, %c0_i32 : i32, i32
  }
  func.func @transform_1(%arg0: i32) -> (i32, i32) {
    %c0_i32 = arith.constant 0 : i32
    %c0_i32_0 = arith.constant 0 : i32
    %c0_i32_1 = arith.constant 0 : i32
    return %c0_i32, %c0_i32_0 : i32, i32
  }
  func.func @transform_2(%arg0: i32) -> (i32, i32) {
    %c0_i32 = arith.constant 0 : i32
    %c0_i32_0 = arith.constant 0 : i32
    %c0_i32_1 = arith.constant 0 : i32
    return %c0_i32, %c0_i32_0 : i32, i32
  }
  func.func @transform_3(%arg0: i32) -> (i32, i32) {
    %c0_i32 = arith.constant 0 : i32
    %c0_i32_0 = arith.constant 0 : i32
    return %arg0, %c0_i32 : i32, i32
  }
}

</mosaic_0001>

<llo_original>
// kernel: tpu_custom_call.1
$region0: #{tpu_custom_call.1}
  #allocation0 [shape = 'u32[]', space=smem, size = 0x4, offset = 0x4, fixed_abs, tag = 'smem constant byte address 0x4 - core index']
  #allocation1 [shape = 'u32[144,128]{1,0:T(1,128)}', space=vmem, size = 0x12000, scoped, tag = 'internal scratch']
  %s0 = inlined_call_operand.hbm [shape: f32[32,32], index: 0, kind: input, shape index: {}]
  %s1 = inlined_call_operand.hbm [shape: f32[32,96], index: 1, kind: input, shape index: {}]
  %s2 = inlined_call_operand.vmem [shape: f32[1,96], index: 2, kind: input, shape index: {}]
  %s3 = inlined_call_operand.hbm [shape: f32[32,96], index: 3, kind: output, shape index: {}]
  %s4 = sld [smem:[#allocation0]]
  $region30: #{tpu_custom_call.1} parent=0
    _
  %s6 = ssub.s32 1, %s4
  %s7 = scalar_select 0, %s6, %s4
  $region1: #{tpu_custom_call.1} parent=0
    #allocation2 [shape = 'u8[16384]{0}', space=vmem, size = 0x4000, scoped, tag = 'input window, operand 0, single buffered']
    #allocation3 [shape = 's32[1]{0}', space=sflag, size = 0x4, scoped, tag = 'scoped memory for tpu_custom_call.1']
    #allocation4 [shape = 's32[1]{0}', space=sflag, size = 0x4, scoped, tag = 'scoped memory for tpu_custom_call.1']
    #allocation5 [shape = 'u8[16384]{0}', space=vmem, size = 0x4000, scoped, tag = 'input window, operand 1, single buffered']
    #allocation6 [shape = 's32[1]{0}', space=sflag, size = 0x4, scoped, tag = 'scoped memory for tpu_custom_call.1']
    #allocation7 [shape = 'u8[16384]{0}', space=vmem, size = 0x4000, scoped, tag = 'output window, operand 0, single buffered']
    %8 = vsyncpa [#allocation3], 0
    %9 = vsyncpa [#allocation6], 0
    %10 = vsyncpa [#allocation4], 0
    // Predicated region
    $region2: #{tpu_custom_call.1} parent=1 // pred_check
      _
    $region3: #{tpu_custom_call.1} parent=1 // pred_check_branch
      %12 = sbr.rel (0) target = $region5
    $region4: #{tpu_custom_call.1} parent=1 // pred_region
      %s14 = ssub.s32 512, 512
      %15 = vsyncadd [#allocation3], %s14
      %s16 = sshll.u32 [#allocation2], 4
      %s17 = int_to_ptr.vmem [resolvable:$true] %s16
      %22 = dma.hbm_to_vmem [thread:$0]  %s0, 512, %s17, [#allocation3], 128, 128, 8
    $region5: #{tpu_custom_call.1} parent=1 // pred_fallthru
      _
    // Predicated region
    $region6: #{tpu_custom_call.1} parent=1 // pred_check
      _
    $region7: #{tpu_custom_call.1} parent=1 // pred_check_branch
      %24 = sbr.rel (0) target = $region9
    $region8: #{tpu_custom_call.1} parent=1 // pred_region
      %s26 = ssub.s32 512, 512
      %27 = vsyncadd [#allocation6], %s26
      %s28 = sshll.u32 [#allocation5], 4
      %s29 = int_to_ptr.vmem [resolvable:$true] %s28
      %34 = dma.hbm_to_vmem [thread:$0]  %s1, 512, %s29, [#allocation6], 128, 128, 8
    $region9: #{tpu_custom_call.1} parent=1 // pred_fallthru
      _
    // Predicated region
    $region10: #{tpu_custom_call.1} parent=1 // pred_check
      _
    $region11: #{tpu_custom_call.1} parent=1 // pred_check_branch
      %36 = sbr.rel (0) target = $region13
    $region12: #{tpu_custom_call.1} parent=1 // pred_region
      _
    $region13: #{tpu_custom_call.1} parent=1 // pred_fallthru
      _
    // Predicated region
    $region14: #{tpu_custom_call.1} parent=1 // pred_check
      _
    $region15: #{tpu_custom_call.1} parent=1 // pred_check_branch
      %38 = sbr.rel (0) target = $region17
    $region16: #{tpu_custom_call.1} parent=1 // pred_region
      %39 = dma.done [#allocation3], 512
    $region17: #{tpu_custom_call.1} parent=1 // pred_fallthru
      _
    // Predicated region
    $region18: #{tpu_custom_call.1} parent=1 // pred_check
      _
    $region19: #{tpu_custom_call.1} parent=1 // pred_check_branch
      %41 = sbr.rel (0) target = $region21
    $region20: #{tpu_custom_call.1} parent=1 // pred_region
      %42 = dma.done [#allocation6], 512
    $region21: #{tpu_custom_call.1} parent=1 // pred_fallthru
      _
    %v43 = vld [vmem:[#allocation2] sm:$0xff]
    %v44 = vld [vmem:[#allocation2 + $0x8] sm:$0xff]
    %v45 = vld [vmem:[#allocation2 + $0x10] sm:$0xff]
    %v46 = vld [vmem:[#allocation2 + $0x18] sm:$0xff]
    %v47 = vld [vmem:[#allocation5] sm:$0xff]
    %v48 = vld [vmem:[#allocation5 + $0x8] sm:$0xff]
    %v49 = vld [vmem:[#allocation5 + $0x10] sm:$0xff]
    %v50 = vld [vmem:[#allocation5 + $0x18] sm:$0xff]
    %v51 = vld [vmem:[%s2] sm:$0x1]
    %v53 = vlaneseq
    %v54 = vshrl.u32 %v53, 7
    %v55 = vsub.s32 0, %v54
    %v56 = vrot.slane %v51, %v55
    %vm58 = vcmask 261120
    %v60 = vsel %vm58, %v43, 0
    %v63 = vsel %vm58, %v44, 0
    %v66 = vsel %vm58, %v45, 0
    %v69 = vsel %vm58, %v46, 0
    %71 = vmatprep.subr.mxu0 0.0
    %72 = vmatpush1.msra.mxu0 0.0
    %73 = vmatprep.subr.mxu0 0.0
    %74 = vmatpush1.msra.mxu0 0.0
    %75 = vmatprep.subr.mxu0 0.0
    %76 = vmatpush1.msra.mxu0 0.0
    %77 = vmatprep.subr.mxu0 0.0
    %78 = vmatpush1.msra.mxu0 0.0
    %79 = vmatprep.subr.mxu0 0.0
    %80 = vmatpush1.msra.mxu0 0.0
    %81 = vmatprep.subr.mxu0 0.0
    %82 = vmatpush1.msra.mxu0 0.0
    %83 = vmatprep.subr.mxu0 0.0
    %84 = vmatpush1.msra.mxu0 0.0
    %85 = vmatprep.subr.mxu0 0.0
    %86 = vmatpush1.msra.mxu0 0.0
    %87 = vmatprep.subr.mxu0 0.0
    %88 = vmatpush1.msra.mxu0 0.0
    %89 = vmatprep.subr.mxu0 0.0
    %90 = vmatpush1.msra.mxu0 0.0
    %91 = vmatprep.subr.mxu0 0.0
    %92 = vmatpush1.msra.mxu0 0.0
    %93 = vmatprep.subr.mxu0 0.0
    %94 = vmatpush1.msra.mxu0 0.0
    %95 = vmatprep.subr.mxu0 0.0
    %96 = vmatpush1.msra.mxu0 %v50
    %97 = vmatprep.subr.mxu0 0.0
    %98 = vmatpush1.msra.mxu0 %v49
    %99 = vmatprep.subr.mxu0 0.0
    %100 = vmatpush1.msra.mxu0 %v48
    %101 = vmatprep.subr.mxu0 0.0
    %102 = vmatpush1.msra.mxu0 %v47
    %103 = vmatprep.subr.mxu0 0.0
    %104 = vmatpush2.msra.mxu0 0.0
    %105 = vmatprep.subr.mxu0 0.0
    %106 = vmatpush2.msra.mxu0 0.0
    %107 = vmatprep.subr.mxu0 0.0
    %108 = vmatpush2.msra.mxu0 0.0
    %109 = vmatprep.subr.mxu0 0.0
    %110 = vmatpush2.msra.mxu0 0.0
    %111 = vmatprep.subr.mxu0 0.0
    %112 = vmatpush2.msra.mxu0 0.0
    %113 = vmatprep.subr.mxu0 0.0
    %114 = vmatpush2.msra.mxu0 0.0
    %115 = vmatprep.subr.mxu0 0.0
    %116 = vmatpush2.msra.mxu0 0.0
    %117 = vmatprep.subr.mxu0 0.0
    %118 = vmatpush2.msra.mxu0 0.0
    %119 = vmatprep.subr.mxu0 0.0
    %120 = vmatpush2.msra.mxu0 0.0
    %121 = vmatprep.subr.mxu0 0.0
    %122 = vmatpush2.msra.mxu0 0.0
    %123 = vmatprep.subr.mxu0 0.0
    %124 = vmatpush2.msra.mxu0 0.0
    %125 = vmatprep.subr.mxu0 0.0
    %126 = vmatpush2.msra.mxu0 0.0
    %127 = vmatprep.subr.mxu0 0.0
    %128 = vmatpush2.msra.mxu0 0.0
    %129 = vmatprep.subr.mxu0 0.0
    %130 = vmatpush2.msra.mxu0 0.0
    %131 = vmatprep.subr.mxu0 0.0
    %132 = vmatpush2.msra.mxu0 0.0
    %133 = vmatprep.subr.mxu0 0.0
    %134 = vmatpush2.msra.mxu0 0.0
    %135 = vmatprep.mubr.f32.mxu0 0.0
    %136 = vmatmul.mubr.f32.gmra.mxu0 %v60
    %v137 = vpop.f32.mrf.mxu0
    %v138 = vadd.f32 %v56, %v137
    %v139 = vpop.f32.mrf.mxu0
    %140 = vmatprep.mubr.f32.mxu0 0.0
    %141 = vmatmul.mubr.f32.gmra.mxu0 %v63
    %v142 = vpop.f32.mrf.mxu0
    %v143 = vadd.f32 %v56, %v142
    %v144 = vpop.f32.mrf.mxu0
    %145 = vmatprep.mubr.f32.mxu0 0.0
    %146 = vmatmul.mubr.f32.gmra.mxu0 %v66
    %v147 = vpop.f32.mrf.mxu0
    %v148 = vadd.f32 %v56, %v147
    %v149 = vpop.f32.mrf.mxu0
    %150 = vmatprep.mubr.f32.mxu0 0.0
    %151 = vmatmul.mubr.f32.gmra.mxu0 %v69
    %v152 = vpop.f32.mrf.mxu0
    %v153 = vadd.f32 %v56, %v152
    %v154 = vpop.f32.mrf.mxu0
    %155 = vdwg.mxu0
    %vm156 = vcmask 785408
    %157 = vst.msk [vmem:[#allocation7] sm:$0xff] %vm156, %v138
    %158 = vst.msk [vmem:[#allocation7 + $0x8] sm:$0xff] %vm156, %v143
    %159 = vst.msk [vmem:[#allocation7 + $0x10] sm:$0xff] %vm156, %v148
    %160 = vst.msk [vmem:[#allocation7 + $0x18] sm:$0xff] %vm156, %v153
    // Predicated region
    $region22: #{tpu_custom_call.1} parent=1 // pred_check
      _
    $region23: #{tpu_custom_call.1} parent=1 // pred_check_branch
      %162 = sbr.rel (0) target = $region25
    $region24: #{tpu_custom_call.1} parent=1 // pred_region
      %s164 = ssub.s32 512, 512
      %165 = vsyncadd [#allocation4], %s164
      %s166 = sshll.u32 [#allocation7], 4
      %s167 = int_to_ptr.vmem [resolvable:$true] %s166
      %172 = dma.vmem_to_hbm [thread:$0]  %s167, 512, %s3, [#allocation4], 128, 128, 8
    $region25: #{tpu_custom_call.1} parent=1 // pred_fallthru
      _
    // Predicated region
    $region26: #{tpu_custom_call.1} parent=1 // pred_check
      _
    $region27: #{tpu_custom_call.1} parent=1 // pred_check_branch
      %174 = sbr.rel (0) target = $region29
    $region28: #{tpu_custom_call.1} parent=1 // pred_region
      %175 = dma.done [#allocation4], 512
    $region29: #{tpu_custom_call.1} parent=1 // pred_fallthru
      _
    %176 = vsyncpa [#allocation3], 1
    %177 = vsyncpa [#allocation6], 1
    %178 = vsyncpa [#allocation4], 1

</llo_original>
